<compile_context>
chip_gen: v5e
topology: v5e:2x2
jax: 0.10.0
libtpu: 0.0.40
codegen_flags: <defaults>
</compile_context>

<pallas_src>
import math

import jax
import jax.numpy as jnp
from jax.experimental import pallas as pl
from jax.experimental.pallas import tpu as pltpu


def _make_conv_relu_kernel(n_batch: int):
    def kernel(p_ref, w_ref, o_ref):
        # p_ref: (N, 9, H*W)   im2col patches, lane axis = H*W (lane-dense)
        # w_ref: (16, 9)       flattened 3x3 filters, (out_channel, kh*3+kw)
        # o_ref: (N, 16, H*W)  channel-major conv output (NCHW after free reshape)
        w = w_ref[...]
        for n in range(n_batch):  # static tiny batch -> unrolled
            y = jnp.dot(w, p_ref[n], preferred_element_type=jnp.float32)  # (16, H*W)
            o_ref[n] = jnp.maximum(y, 0.0)

    return kernel


@jax.jit
def mynet_forward(x_nchw: jax.Array, weight_oihw: jax.Array) -> jax.Array:
    """x_nchw: (N, 1, H, W) f32, weight_oihw: (16, 1, 3, 3) f32 -> (N, 16, H, W)."""
    N, C, H, W = x_nchw.shape
    assert C == 1
    Cout = weight_oihw.shape[0]
    HW = H * W

    # Wrapper-side glue (plain JAX, fused by XLA): zero-pad (padding=1) and build
    # lane-dense im2col patches so the kernel does no in-kernel relayout.
    x2d = x_nchw[:, 0, :, :].astype(jnp.float32)                    # (N, H, W)
    x_pad = jnp.pad(x2d, ((0, 0), (1, 1), (1, 1)))                  # (N, H+2, W+2)
    patches = jnp.stack(
        [x_pad[:, kh:kh + H, kw:kw + W].reshape(N, HW)
         for kh in range(3) for kw in range(3)],
        axis=1)                                                     # (N, 9, H*W)
    w_flat = weight_oihw.reshape(Cout, 9).astype(jnp.float32)       # (16, 9), kh*3+kw

    kernel = _make_conv_relu_kernel(N)

    out = pl.pallas_call(
        kernel,
        out_shape=jax.ShapeDtypeStruct((N, Cout, HW), jnp.float32),
        grid_spec=pltpu.PrefetchScalarGridSpec(
            num_scalar_prefetch=0,
            grid=(1,),  # entire batch fused into one invocation
            in_specs=[
                pl.BlockSpec((N, 9, HW), lambda i: (0, 0, 0)),
                pl.BlockSpec((Cout, 9), lambda i: (0, 0)),
            ],
            out_specs=pl.BlockSpec((N, Cout, HW), lambda i: (0, 0, 0)),
        ),
        compiler_params=pltpu.CompilerParams(
            dimension_semantics=("arbitrary",),
        ),
    )(patches, w_flat)

    # (N, 16, H*W) is already channel-major contiguous NCHW -> free reshape,
    # no transpose / extra HBM round trip.
    return out.reshape(N, Cout, H, W)


def init_weights(key) -> jax.Array:
    # kaiming_normal_ default: fan_in mode, a=0 -> std = sqrt(2 / fan_in)
    fan_in = 1 * 3 * 3
    std = math.sqrt(2.0 / fan_in)
    return jax.random.normal(key, (16, 1, 3, 3), dtype=jnp.float32) * std


if __name__ == "__main__":
    key = jax.random.PRNGKey(0)
    k_x, k_w = jax.random.split(key)

    N, C, H, W = 2, 1, 16, 16
    x = jax.random.normal(k_x, (N, C, H, W), dtype=jnp.float32)
    weight = init_weights(k_w)

    y = mynet_forward(x, weight)
    y = jax.block_until_ready(y)

    # Reference check against XLA conv (same semantics as PyTorch Conv2d + ReLU).
    y_ref = jax.lax.conv_general_dilated(
        x, weight, window_strides=(1, 1), padding=((1, 1), (1, 1)),
        dimension_numbers=("NCHW", "OIHW", "NCHW"))
    y_ref = jnp.maximum(y_ref, 0.0)
    assert y.shape == (N, 16, H, W)
    assert jnp.allclose(y, y_ref, atol=1e-5, rtol=1e-5)

    print("KERNEL_OK")
</pallas_src>

<mosaic_0001>
module attributes {stable_mosaic.version = 11 : i64} {
  func.func @kernel(%arg0: i32, %arg1: memref<2x9x256xf32, #tpu.memory_space<vmem>>, %arg2: memref<16x9xf32, #tpu.memory_space<vmem>>, %arg3: memref<2x16x256xf32, #tpu.memory_space<vmem>>) attributes {dimension_semantics = [#tpu.dimension_semantics<arbitrary>], iteration_bounds = array<i64: 1>, scalar_prefetch = 0 : i64, scratch_operands = 0 : i64, tpu.core_type = #tpu.core_type<tc>, window_params = [{pipeline_mode = #tpu.pipeline_mode<synchronous>, transform_indices = @transform_0, window_bounds = array<i64: 2, 9, 256>}, {pipeline_mode = #tpu.pipeline_mode<synchronous>, transform_indices = @transform_1, window_bounds = array<i64: 16, 9>}, {pipeline_mode = #tpu.pipeline_mode<synchronous>, transform_indices = @transform_2, window_bounds = array<i64: 2, 16, 256>}]} {
    %c0 = arith.constant 0 : index
    %c0_0 = arith.constant 0 : index
    %0 = vector.load %arg2[%c0, %c0_0] : memref<16x9xf32, #tpu.memory_space<vmem>>, vector<16x9xf32>
    %c0_1 = arith.constant 0 : index
    %c0_2 = arith.constant 0 : index
    %c0_3 = arith.constant 0 : index
    %1 = vector.load %arg1[%c0_1, %c0_2, %c0_3] : memref<2x9x256xf32, #tpu.memory_space<vmem>>, vector<1x9x256xf32>
    %2 = vector.shape_cast %1 : vector<1x9x256xf32> to vector<9x256xf32>
    %cst = arith.constant dense<0.000000e+00> : vector<16x256xf32>
    %3 = tpu.matmul %0, %2, %cst {dimension_numbers = #tpu.dot_dimension_numbers<[1], [0], [0], [1], [0, 0, 1, 1], [], []>} : vector<16x9xf32>, vector<9x256xf32>, vector<16x256xf32> -> vector<16x256xf32>
    %cst_4 = arith.constant 0.000000e+00 : f32
    %4 = vector.broadcast %cst_4 : f32 to vector<16x256xf32>
    %5 = arith.maximumf %3, %4 : vector<16x256xf32>
    %c0_5 = arith.constant 0 : index
    %c0_6 = arith.constant 0 : index
    %c0_7 = arith.constant 0 : index
    %6 = vector.load %arg3[%c0_5, %c0_6, %c0_7] : memref<2x16x256xf32, #tpu.memory_space<vmem>>, vector<1x16x256xf32>
    %7 = vector.shape_cast %6 : vector<1x16x256xf32> to vector<16x256xf32>
    %8 = vector.shape_cast %5 : vector<16x256xf32> to vector<1x16x256xf32>
    tpu.vector_store %arg3[%c0_5, %c0_6, %c0_7], %8 {strides = array<i32>} : memref<2x16x256xf32, #tpu.memory_space<vmem>>, vector<1x16x256xf32>,
    %c1 = arith.constant 1 : index
    %c0_8 = arith.constant 0 : index
    %c0_9 = arith.constant 0 : index
    %9 = vector.load %arg1[%c1, %c0_8, %c0_9] : memref<2x9x256xf32, #tpu.memory_space<vmem>>, vector<1x9x256xf32>
    %10 = vector.shape_cast %9 : vector<1x9x256xf32> to vector<9x256xf32>
    %cst_10 = arith.constant dense<0.000000e+00> : vector<16x256xf32>
    %11 = tpu.matmul %0, %10, %cst_10 {dimension_numbers = #tpu.dot_dimension_numbers<[1], [0], [0], [1], [0, 0, 1, 1], [], []>} : vector<16x9xf32>, vector<9x256xf32>, vector<16x256xf32> -> vector<16x256xf32>
    %cst_11 = arith.constant 0.000000e+00 : f32
    %12 = vector.broadcast %cst_11 : f32 to vector<16x256xf32>
    %13 = arith.maximumf %11, %12 : vector<16x256xf32>
    %c1_12 = arith.constant 1 : index
    %c0_13 = arith.constant 0 : index
    %c0_14 = arith.constant 0 : index
    %14 = vector.load %arg3[%c1_12, %c0_13, %c0_14] : memref<2x16x256xf32, #tpu.memory_space<vmem>>, vector<1x16x256xf32>
    %15 = vector.shape_cast %14 : vector<1x16x256xf32> to vector<16x256xf32>
    %16 = vector.shape_cast %13 : vector<16x256xf32> to vector<1x16x256xf32>
    tpu.vector_store %arg3[%c1_12, %c0_13, %c0_14], %16 {strides = array<i32>} : memref<2x16x256xf32, #tpu.memory_space<vmem>>, vector<1x16x256xf32>,
    return
  }
  func.func @transform_0(%arg0: i32) -> (i32, i32, i32) {
    %c0_i32 = arith.constant 0 : i32
    %c0_i32_0 = arith.constant 0 : i32
    %c0_i32_1 = arith.constant 0 : i32
    %c0_i32_2 = arith.constant 0 : i32
    return %c0_i32, %c0_i32_0, %c0_i32_1 : i32, i32, i32
  }
  func.func @transform_1(%arg0: i32) -> (i32, i32) {
    %c0_i32 = arith.constant 0 : i32
    %c0_i32_0 = arith.constant 0 : i32
    %c0_i32_1 = arith.constant 0 : i32
    return %c0_i32, %c0_i32_0 : i32, i32
  }
  func.func @transform_2(%arg0: i32) -> (i32, i32, i32) {
    %c0_i32 = arith.constant 0 : i32
    %c0_i32_0 = arith.constant 0 : i32
    %c0_i32_1 = arith.constant 0 : i32
    %c0_i32_2 = arith.constant 0 : i32
    return %c0_i32, %c0_i32_0, %c0_i32_1 : i32, i32, i32
  }
}

</mosaic_0001>

<llo_original>
// kernel: mynet_forward.1
$region0: #{mynet_forward.1}
  #allocation0 [shape = 'u32[]', space=smem, size = 0x4, offset = 0x4, fixed_abs, tag = 'smem constant byte address 0x4 - core index']
  #allocation1 [shape = 'u32[72,128]{1,0:T(1,128)}', space=vmem, size = 0x9000, scoped, tag = 'internal scratch']
  %s0 = inlined_call_operand.vmem [shape: f32[2,9,256], index: 0, kind: input, shape index: {}]
  %s1 = inlined_call_operand.vmem [shape: f32[16,9], index: 1, kind: input, shape index: {}]
  %s2 = inlined_call_operand.vmem [shape: f32[2,16,256], index: 2, kind: output, shape index: {}]
  %s3 = sld [smem:[#allocation0]]
  $region18: #{mynet_forward.1} parent=0
    _
  %s5 = ssub.s32 1, %s3
  %s6 = scalar_select 0, %s5, %s3
  // Predicated region
  $region2: #{mynet_forward.1} parent=0 // pred_check
    _
  $region3: #{mynet_forward.1} parent=0 // pred_check_branch
    %8 = sbr.rel (0) target = $region5
  $region4: #{mynet_forward.1} parent=0 // pred_region
    _
  $region5: #{mynet_forward.1} parent=0 // pred_fallthru
    _
  // Predicated region
  $region6: #{mynet_forward.1} parent=0 // pred_check
    _
  $region7: #{mynet_forward.1} parent=0 // pred_check_branch
    %10 = sbr.rel (0) target = $region9
  $region8: #{mynet_forward.1} parent=0 // pred_region
    _
  $region9: #{mynet_forward.1} parent=0 // pred_fallthru
    _
  %v11 = vld [vmem:[%s1] sm:$0xff]
  %v12 = vld [vmem:[%s1 + $0x8] sm:$0xff]
  %v13 = vld [vmem:[%s0] sm:$0xff]
  %v14 = vld [vmem:[%s0 + $0x8] sm:$0xff]
  %v15 = vld [vmem:[%s0 + $0x10] sm:$0x1]
  %v16 = vld [vmem:[%s0 + $0x18] sm:$0x1]
  %vm17 = vcmask 72704
  %v19 = vsel %vm17, %v11, 0
  %v22 = vsel %vm17, %v12, 0
  %vm24 = vcmask 1040384
  %v26 = vsel %vm24, %v15, 0
  %v29 = vsel %vm24, %v16, 0
  %31 = vmatpush.msra.mxu0 0.0
  %32 = vmatpush.msra.mxu0 0.0
  %33 = vmatpush.msra.mxu0 0.0
  %34 = vmatpush.msra.mxu0 0.0
  %35 = vmatpush.msra.mxu0 0.0
  %36 = vmatpush.msra.mxu0 0.0
  %37 = vmatpush.msra.mxu0 0.0
  %38 = vmatpush.msra.mxu0 0.0
  %39 = vmatpush.msra.mxu0 0.0
  %40 = vmatpush.msra.mxu0 0.0
  %41 = vmatpush.msra.mxu0 0.0
  %42 = vmatpush.msra.mxu0 0.0
  %43 = vmatpush.msra.mxu0 0.0
  %44 = vmatpush.msra.mxu0 0.0
  %45 = vmatpush.msra.mxu0 %v26
  %46 = vmatpush.msra.mxu0 %v13
  %47 = vmatmul.f32.gmra.mxu0 %v19
  %v48 = vpop.f32.mrf.mxu0
  %v49 = vadd.f32 0.0, %v48
  %50 = vmatmul.f32.gmra.mxu0 %v22
  %v51 = vpop.f32.mrf.mxu0
  %v52 = vadd.f32 0.0, %v51
  %53 = vdwg.mxu0
  %54 = vmatpush.msra.mxu0 0.0
  %55 = vmatpush.msra.mxu0 0.0
  %56 = vmatpush.msra.mxu0 0.0
  %57 = vmatpush.msra.mxu0 0.0
  %58 = vmatpush.msra.mxu0 0.0
  %59 = vmatpush.msra.mxu0 0.0
  %60 = vmatpush.msra.mxu0 0.0
  %61 = vmatpush.msra.mxu0 0.0
  %62 = vmatpush.msra.mxu0 0.0
  %63 = vmatpush.msra.mxu0 0.0
  %64 = vmatpush.msra.mxu0 0.0
  %65 = vmatpush.msra.mxu0 0.0
  %66 = vmatpush.msra.mxu0 0.0
  %67 = vmatpush.msra.mxu0 0.0
  %68 = vmatpush.msra.mxu0 %v29
  %69 = vmatpush.msra.mxu0 %v14
  %70 = vmatmul.f32.gmra.mxu0 %v19
  %v71 = vpop.f32.mrf.mxu0
  %v72 = vadd.f32 0.0, %v71
  %73 = vmatmul.f32.gmra.mxu0 %v22
  %v74 = vpop.f32.mrf.mxu0
  %v75 = vadd.f32 0.0, %v74
  %76 = vdwg.mxu0
  %v77 = vmax.f32 %v49, 0.0
  %v78 = vmax.f32 %v72, 0.0
  %v79 = vmax.f32 %v52, 0.0
  %v80 = vmax.f32 %v75, 0.0
  %81 = vst [vmem:[%s2] sm:$0xff] %v77
  %82 = vst [vmem:[%s2 + $0x8] sm:$0xff] %v78
  %83 = vst [vmem:[%s2 + $0x10] sm:$0xff] %v79
  %84 = vst [vmem:[%s2 + $0x18] sm:$0xff] %v80
  %s85 = scalar_lea.vmem %s0, 32
  %v86 = vld [vmem:[%s85] sm:$0xff]
  %v87 = vld [vmem:[%s85 + $0x8] sm:$0xff]
  %v88 = vld [vmem:[%s85 + $0x10] sm:$0x1]
  %v89 = vld [vmem:[%s85 + $0x18] sm:$0x1]
  %v91 = vsel %vm24, %v88, 0
  %v94 = vsel %vm24, %v89, 0
  %96 = vmatpush.msra.mxu0 0.0
  %97 = vmatpush.msra.mxu0 0.0
  %98 = vmatpush.msra.mxu0 0.0
  %99 = vmatpush.msra.mxu0 0.0
  %100 = vmatpush.msra.mxu0 0.0
  %101 = vmatpush.msra.mxu0 0.0
  %102 = vmatpush.msra.mxu0 0.0
  %103 = vmatpush.msra.mxu0 0.0
  %104 = vmatpush.msra.mxu0 0.0
  %105 = vmatpush.msra.mxu0 0.0
  %106 = vmatpush.msra.mxu0 0.0
  %107 = vmatpush.msra.mxu0 0.0
  %108 = vmatpush.msra.mxu0 0.0
  %109 = vmatpush.msra.mxu0 0.0
  %110 = vmatpush.msra.mxu0 %v91
  %111 = vmatpush.msra.mxu0 %v86
  %112 = vmatmul.f32.gmra.mxu0 %v19
  %v113 = vpop.f32.mrf.mxu0
  %v114 = vadd.f32 0.0, %v113
  %115 = vmatmul.f32.gmra.mxu0 %v22
  %v116 = vpop.f32.mrf.mxu0
  %v117 = vadd.f32 0.0, %v116
  %118 = vdwg.mxu0
  %119 = vmatpush.msra.mxu0 0.0
  %120 = vmatpush.msra.mxu0 0.0
  %121 = vmatpush.msra.mxu0 0.0
  %122 = vmatpush.msra.mxu0 0.0
  %123 = vmatpush.msra.mxu0 0.0
  %124 = vmatpush.msra.mxu0 0.0
  %125 = vmatpush.msra.mxu0 0.0
  %126 = vmatpush.msra.mxu0 0.0
  %127 = vmatpush.msra.mxu0 0.0
  %128 = vmatpush.msra.mxu0 0.0
  %129 = vmatpush.msra.mxu0 0.0
  %130 = vmatpush.msra.mxu0 0.0
  %131 = vmatpush.msra.mxu0 0.0
  %132 = vmatpush.msra.mxu0 0.0
  %133 = vmatpush.msra.mxu0 %v94
  %134 = vmatpush.msra.mxu0 %v87
  %135 = vmatmul.f32.gmra.mxu0 %v19
  %v136 = vpop.f32.mrf.mxu0
  %v137 = vadd.f32 0.0, %v136
  %138 = vmatmul.f32.gmra.mxu0 %v22
  %v139 = vpop.f32.mrf.mxu0
  %v140 = vadd.f32 0.0, %v139
  %141 = vdwg.mxu0
  %v142 = vmax.f32 %v114, 0.0
  %v143 = vmax.f32 %v137, 0.0
  %v144 = vmax.f32 %v117, 0.0
  %v145 = vmax.f32 %v140, 0.0
  %s146 = scalar_lea.vmem %s2, 32
  %147 = vst [vmem:[%s146] sm:$0xff] %v142
  %148 = vst [vmem:[%s146 + $0x8] sm:$0xff] %v143
  %149 = vst [vmem:[%s146 + $0x10] sm:$0xff] %v144
  %150 = vst [vmem:[%s146 + $0x18] sm:$0xff] %v145
  // Predicated region
  $region10: #{mynet_forward.1} parent=0 // pred_check
    _
  $region11: #{mynet_forward.1} parent=0 // pred_check_branch
    %152 = sbr.rel (0) target = $region13
  $region12: #{mynet_forward.1} parent=0 // pred_region
    _
  $region13: #{mynet_forward.1} parent=0 // pred_fallthru
    _
  // Predicated region
  $region14: #{mynet_forward.1} parent=0 // pred_check
    _
  $region15: #{mynet_forward.1} parent=0 // pred_check_branch
    %154 = sbr.rel (0) target = $region17
  $region16: #{mynet_forward.1} parent=0 // pred_region
    _
  $region17: #{mynet_forward.1} parent=0 // pred_fallthru
    _

</llo_original>
